<compile_context>
chip_gen: v7x
topology: tpu7x:2x2x1
jax: 0.10.0
libtpu: 0.0.40
codegen_flags: <defaults>
</compile_context>

<pallas_src>
import math
from typing import NamedTuple, Optional, Tuple

import jax
import jax.numpy as jnp
from jax.experimental import pallas as pl
from jax.experimental.pallas import tpu as pltpu


_LANE = 128


def _round_up(x, m):
    return ((x + m - 1) // m) * m


def _vmem_capacity_bytes():
    """Physical per-core VMEM; conservative 64 MiB (v7x) fallback."""
    try:
        cap = int(pltpu.get_tpu_info().vmem_capacity_bytes)
        if cap > 0:
            return cap
    except Exception:
        pass
    return 64 << 20


def _choose_tiles(t_max, rows, batch_hint, budget_bytes):
    """Pick (t_tile, r_tile) so the double-buffered working set fits budget.

    t_tile is the K tile over temporal frames (full T rounded to 8, else a
    multiple of 128); r_tile is the number of 128-lane rows of the flattened
    feature axis per step (n_tile = r_tile * 128).  Prefers the biggest tiles
    that fit (per-step overhead ~0.35 us amortizes with tile size) while
    keeping the output lane-dense.
    """
    t_full = _round_up(t_max, 8)

    def max_rows_for(tt):
        # bytes ~= rows*128*4*(2*tt + 3*B) [V x2, out x2, acc] + 2*B*tt*4 [W x2]
        per_row = _LANE * 4 * (2 * tt + 3 * batch_hint)
        fixed = 2 * batch_hint * tt * 4
        return max(0, (budget_bytes - fixed) // per_row)

    for tt in [t_full] + [c for c in (512, 256, 128) if c < t_full]:
        if max_rows_for(tt) >= rows:
            return tt, rows
    tt = 128 if t_full > 128 else t_full
    return tt, int(max(1, min(rows, max_rows_for(tt))))


class PackedVideoGrids(NamedTuple):
    values: jnp.ndarray          # (n_grids, T_pad, F_pad) float32, zero padded
    t_dims: Tuple[int, ...]      # original temporal sizes per grid
    channels: int                # channels per grid
    height: int
    width: int
    feat: int                    # C*H*W
    feat_pad: int                # feat rounded up to r_tile*128 blocks
    t_pad: int                   # max(T) rounded up to t_tile blocks
    t_tile: int
    r_tile: int


def pack_video_grids(video_grids, *, max_batch_hint=64):
    """One-time init step: lane-dense, tile-padded packing of all grids.

    Hoists all padding / reshaping out of the per-call forward path.
    """
    n_grids = len(video_grids)
    t_dims = tuple(int(vg.shape[0]) for vg in video_grids)
    c_per, h, w = (int(d) for d in video_grids[0].shape[1:])
    for vg in video_grids:
        assert tuple(vg.shape[1:]) == (c_per, h, w), "grids must share (C, H, W)"
    feat = c_per * h * w
    rows = pl.cdiv(feat, _LANE)

    budget = min(_vmem_capacity_bytes() // 3, 24 << 20)
    t_tile, r_tile = _choose_tiles(max(t_dims), rows, max_batch_hint, budget)
    t_pad = _round_up(max(t_dims), t_tile)
    feat_pad = _round_up(rows, r_tile) * _LANE

    vals = jnp.zeros((n_grids, t_pad, feat_pad), jnp.float32)
    for g, vg in enumerate(video_grids):
        flat = jnp.asarray(vg, jnp.float32).reshape(t_dims[g], feat)
        vals = vals.at[g, : t_dims[g], :feat].set(flat)

    return PackedVideoGrids(values=vals, t_dims=t_dims, channels=c_per, height=h,
                            width=w, feat=feat, feat_pad=feat_pad, t_pad=t_pad,
                            t_tile=t_tile, r_tile=r_tile)


def _build_coeff_matrix(t, packed: PackedVideoGrids):
    """(n_grids, B, T_pad) dense interpolation weights (2 nonzeros per row)."""
    tf = t.astype(jnp.float32)
    frame_idx = jnp.arange(packed.t_pad, dtype=jnp.int32)
    rows = []
    for T in packed.t_dims:
        inp = tf * jnp.float32(T)
        left = jnp.floor(inp + 1e-6).astype(jnp.int32)
        # Safety clamp: PyTorch would OOB-index when t*T >= T - 1e-6; we clamp
        # to the last frame instead (matches the JAX reference's gather clamp).
        left = jnp.clip(left, 0, T - 1)
        right = jnp.minimum(left + 1, T - 1)
        d_left = inp - left.astype(jnp.float32)
        d_right = right.astype(jnp.float32) - inp
        corr = (right - left - 1).astype(jnp.float32)
        coef_l = d_right - corr          # folds the -(right-left-1)*vg[left] term
        coef_r = d_left
        # When right == left (last frame) the two one-hots coincide and the
        # coefficients add: coef_l + coef_r == 1, matching the module exactly.
        w = (jnp.where(frame_idx[None, :] == left[:, None], coef_l[:, None], 0.0)
             + jnp.where(frame_idx[None, :] == right[:, None], coef_r[:, None], 0.0))
        rows.append(w)                   # (B, T_pad); zero outside [0, T)
    return jnp.stack(rows, axis=0)       # (n_grids, B, T_pad)


def _interp_matmul(coeffs, packed: PackedVideoGrids):
    """out(B, n_grids*F_pad) = per-grid W(B,T_pad) @ V(T_pad,F_pad), fused."""
    n_grids, t_pad, f_pad = packed.values.shape
    B = coeffs.shape[1]
    t_tile, r_tile = packed.t_tile, packed.r_tile
    n_tile = r_tile * _LANE
    n_kb = t_pad // t_tile
    n_nb = f_pad // n_tile

    def kernel(w_ref, v_ref, out_ref, acc_ref):
        @pl.when(pl.program_id(2) == 0)
        def _init():
            acc_ref[...] = jnp.zeros_like(acc_ref)

        acc_ref[...] += jnp.dot(w_ref[0], v_ref[0],
                                preferred_element_type=jnp.float32,
                                precision=jax.lax.Precision.HIGHEST)

        @pl.when(pl.program_id(2) == n_kb - 1)
        def _done():
            out_ref[...] = acc_ref[...].astype(out_ref.dtype)

    # Working set (double-buffered blocks + accumulator); only raise the
    # scoped-VMEM limit when we actually need more than the default.
    needed = (2 * t_tile * n_tile * 4      # V blocks
              + 2 * B * t_tile * 4         # W blocks
              + 3 * B * n_tile * 4)        # out blocks + acc scratch
    vmem_limit = None
    if needed > (12 << 20):
        vmem_limit = int(min(_vmem_capacity_bytes() * 3 // 4, needed + (8 << 20)))

    return pl.pallas_call(
        kernel,
        out_shape=jax.ShapeDtypeStruct((B, n_grids * f_pad), packed.values.dtype),
        grid_spec=pltpu.PrefetchScalarGridSpec(
            num_scalar_prefetch=0,
            grid=(n_grids, n_nb, n_kb),
            in_specs=[
                # coefficients: (1, B, t_tile) block of (n_grids, B, T_pad)
                pl.BlockSpec((1, B, t_tile), lambda g, j, k: (g, 0, k)),
                # grid values: (1, t_tile, n_tile) block of (n_grids, T_pad, F_pad)
                pl.BlockSpec((1, t_tile, n_tile), lambda g, j, k: (g, k, j)),
            ],
            # each grid writes its own lane-dense column slab of the single
            # fused output buffer — no post-kernel concatenate.
            out_specs=pl.BlockSpec((B, n_tile), lambda g, j, k: (0, g * n_nb + j)),
            scratch_shapes=[pltpu.VMEM((B, n_tile), jnp.float32)],
        ),
        compiler_params=pltpu.CompilerParams(
            dimension_semantics=("parallel", "parallel", "arbitrary"),
            vmem_limit_bytes=vmem_limit),
    )(coeffs, packed.values)


def pos_encoding_ffnerv_forward(t, packed: PackedVideoGrids, manip_bases=None):
    """Equivalent of PosEncodingFFNeRV.forward on pre-packed video grids."""
    assert t.ndim == 1
    B = t.shape[0]
    n_grids = len(packed.t_dims)

    coeffs = _build_coeff_matrix(t, packed)            # (n_grids, B, T_pad)
    flat = _interp_matmul(coeffs, packed)               # (B, n_grids*F_pad)

    if packed.feat_pad == packed.feat:
        output = flat.reshape(B, n_grids * packed.channels, packed.height, packed.width)
    else:
        output = (flat.reshape(B, n_grids, packed.feat_pad)[:, :, : packed.feat]
                  .reshape(B, n_grids * packed.channels, packed.height, packed.width))

    embed_dict = {"t_embed": output}
    if manip_bases is not None:
        # Tiny sin/cos embedding: plain JAX (launch-overhead dominated as a
        # kernel; XLA fuses it for free).
        vals = t.astype(jnp.float32)[:, None] * manip_bases.astype(jnp.float32)[None, :]
        embed_dict["t_manipulate_embed"] = jnp.concatenate(
            [jnp.sin(vals), jnp.cos(vals)], axis=-1)
    return embed_dict


# ---------------------------------------------------------------------------
# Deterministic parameter init (xavier_uniform, same fan rules as PyTorch)
# ---------------------------------------------------------------------------
def _xavier_uniform(key, shape):
    T, C, H, W = shape
    receptive = H * W
    fan_in = C * receptive
    fan_out = T * receptive
    bound = math.sqrt(6.0 / (fan_in + fan_out))
    return jax.random.uniform(key, shape, jnp.float32, -bound, bound)


# ---------------------------------------------------------------------------
# Pure-JAX reference (mirrors the PyTorch module) for correctness checking
# ---------------------------------------------------------------------------
def _reference_forward(t, video_grids, manip_bases):
    out_list = []
    for vg in video_grids:
        T = vg.shape[0]
        inp = t * T
        left = jnp.floor(inp + 1e-6).astype(jnp.int32)
        right = jnp.minimum(left + 1, T - 1)
        d_left = (inp - left).reshape(-1, 1, 1, 1)
        d_right = (right - inp).reshape(-1, 1, 1, 1)
        corr = (right - left - 1).astype(jnp.float32).reshape(-1, 1, 1, 1)
        out_list.append(d_right * vg[left] + d_left * vg[right] - corr * vg[left])
    output = jnp.concatenate(out_list, axis=1)
    manip = None
    if manip_bases is not None:
        vals = t[:, None] * manip_bases[None, :]
        manip = jnp.concatenate([jnp.sin(vals), jnp.cos(vals)], axis=-1)
    return output, manip


def _make_case(t_dim, fc_dim, fc_h, fc_w, batch, seed):
    n_grids = len(t_dim)
    keys = jax.random.split(jax.random.PRNGKey(seed), n_grids + 1)
    video_grids = [
        _xavier_uniform(keys[i], (t_dim[i], fc_dim // n_grids, fc_h, fc_w))
        for i in range(n_grids)
    ]
    t = jax.random.uniform(keys[-1], (batch,), jnp.float32)
    return t, video_grids


def _run_case(t, video_grids, manip_bases):
    packed = pack_video_grids(video_grids)       # one-time packing / padding
    fwd = jax.jit(lambda tt, vals, mb: pos_encoding_ffnerv_forward(
        tt, packed._replace(values=vals), mb))
    return jax.block_until_ready(fwd(t, packed.values, manip_bases))


if __name__ == "__main__":
    # --- main case: lane-aligned features (C*H*W = 4*8*16 = 512), two grids
    #     with different temporal sizes, plus the sin/cos manipulation embed.
    t_dim = (8, 4)
    fc_dim, fc_h, fc_w = 8, 8, 16
    manip_lbase, manip_levels = 2.0, 4
    B = 4

    manip_bases = (manip_lbase ** jnp.arange(manip_levels, dtype=jnp.float32)) * math.pi
    t, video_grids = _make_case(t_dim, fc_dim, fc_h, fc_w, B, seed=0)
    out = _run_case(t, video_grids, manip_bases)

    assert out["t_embed"].shape == (B, fc_dim, fc_h, fc_w)
    assert out["t_manipulate_embed"].shape == (B, 2 * manip_levels)
    ref_embed, ref_manip = _reference_forward(t, video_grids, manip_bases)
    assert jnp.allclose(out["t_embed"], ref_embed, atol=1e-5, rtol=1e-5)
    assert jnp.allclose(out["t_manipulate_embed"], ref_manip, atol=1e-5, rtol=1e-5)

    # --- secondary case: ragged feature dim (C*H*W = 3*5*10 = 150, not a
    #     multiple of 128) and padded temporal axes — exercises the pad/slice
    #     branch flagged in the review.
    t_dim2, fc_dim2, h2, w2, B2 = (5, 3), 6, 5, 10, 3
    t2, video_grids2 = _make_case(t_dim2, fc_dim2, h2, w2, B2, seed=0)
    out2 = _run_case(t2, video_grids2, None)

    assert out2["t_embed"].shape == (B2, fc_dim2, h2, w2)
    ref_embed2, _ = _reference_forward(t2, video_grids2, None)
    assert jnp.allclose(out2["t_embed"], ref_embed2, atol=1e-5, rtol=1e-5)

    print("KERNEL_OK")
</pallas_src>

<mosaic_0001>
module attributes {stable_mosaic.version = 11 : i64} {
  func.func @kernel(%arg0: i32, %arg1: i32, %arg2: i32, %arg3: memref<1x4x8xf32, #tpu.memory_space<vmem>>, %arg4: memref<1x8x512xf32, #tpu.memory_space<vmem>>, %arg5: memref<4x512xf32, #tpu.memory_space<vmem>>, %arg6: memref<4x512xf32, #tpu.memory_space<vmem>>) attributes {dimension_semantics = [#tpu.dimension_semantics<parallel>, #tpu.dimension_semantics<parallel>, #tpu.dimension_semantics<arbitrary>], iteration_bounds = array<i64: 2, 1, 1>, scalar_prefetch = 0 : i64, scratch_operands = 1 : i64, tpu.core_type = #tpu.core_type<tc>, window_params = [{transform_indices = @transform_0, window_bounds = array<i64: 1, 4, 8>}, {transform_indices = @transform_1, window_bounds = array<i64: 1, 8, 512>}, {transform_indices = @transform_2, window_bounds = array<i64: 4, 512>}]} {
    %c0_i32 = arith.constant 0 : i32
    %0 = arith.cmpi eq, %arg2, %c0_i32 : i32
    %1 = arith.extui %0 : i1 to i32
    %c0_i32_0 = arith.constant 0 : i32
    %2 = arith.cmpi ne, %1, %c0_i32_0 : i32
    scf.if %2 {
      %cst_12 = arith.constant 0.000000e+00 : f32
      %14 = vector.broadcast %cst_12 : f32 to vector<4x512xf32>
      %c0_13 = arith.constant 0 : index
      %c0_14 = arith.constant 0 : index
      %15 = vector.load %arg6[%c0_13, %c0_14] : memref<4x512xf32, #tpu.memory_space<vmem>>, vector<4x512xf32>
      tpu.vector_store %arg6[%c0_13, %c0_14], %14 {strides = array<i32>} : memref<4x512xf32, #tpu.memory_space<vmem>>, vector<4x512xf32>,
    } else {
    }
    %c0 = arith.constant 0 : index
    %c0_1 = arith.constant 0 : index
    %3 = vector.load %arg6[%c0, %c0_1] : memref<4x512xf32, #tpu.memory_space<vmem>>, vector<4x512xf32>
    %c0_2 = arith.constant 0 : index
    %c0_3 = arith.constant 0 : index
    %c0_4 = arith.constant 0 : index
    %4 = vector.load %arg3[%c0_2, %c0_3, %c0_4] : memref<1x4x8xf32, #tpu.memory_space<vmem>>, vector<1x4x8xf32>
    %5 = vector.shape_cast %4 : vector<1x4x8xf32> to vector<4x8xf32>
    %c0_5 = arith.constant 0 : index
    %c0_6 = arith.constant 0 : index
    %c0_7 = arith.constant 0 : index
    %6 = vector.load %arg4[%c0_5, %c0_6, %c0_7] : memref<1x8x512xf32, #tpu.memory_space<vmem>>, vector<1x8x512xf32>
    %7 = vector.shape_cast %6 : vector<1x8x512xf32> to vector<8x512xf32>
    %cst = arith.constant dense<0.000000e+00> : vector<4x512xf32>
    %8 = tpu.matmul %5, %7, %cst {dimension_numbers = #tpu.dot_dimension_numbers<[1], [0], [0], [1], [0, 0, 1, 1], [], []>, precision = #tpu.contract_precision<fp32>} : vector<4x8xf32>, vector<8x512xf32>, vector<4x512xf32> -> vector<4x512xf32>
    %9 = arith.addf %3, %8 : vector<4x512xf32>
    %c0_8 = arith.constant 0 : index
    %c0_9 = arith.constant 0 : index
    %10 = vector.load %arg6[%c0_8, %c0_9] : memref<4x512xf32, #tpu.memory_space<vmem>>, vector<4x512xf32>
    tpu.vector_store %arg6[%c0_8, %c0_9], %9 {strides = array<i32>} : memref<4x512xf32, #tpu.memory_space<vmem>>, vector<4x512xf32>,
    %c0_i32_10 = arith.constant 0 : i32
    %11 = arith.cmpi eq, %arg2, %c0_i32_10 : i32
    %12 = arith.extui %11 : i1 to i32
    %c0_i32_11 = arith.constant 0 : i32
    %13 = arith.cmpi ne, %12, %c0_i32_11 : i32
    scf.if %13 {
      %c0_12 = arith.constant 0 : index
      %c0_13 = arith.constant 0 : index
      %14 = vector.load %arg6[%c0_12, %c0_13] : memref<4x512xf32, #tpu.memory_space<vmem>>, vector<4x512xf32>
      %c0_14 = arith.constant 0 : index
      %c0_15 = arith.constant 0 : index
      %15 = vector.load %arg5[%c0_14, %c0_15] : memref<4x512xf32, #tpu.memory_space<vmem>>, vector<4x512xf32>
      tpu.vector_store %arg5[%c0_14, %c0_15], %14 {strides = array<i32>} : memref<4x512xf32, #tpu.memory_space<vmem>>, vector<4x512xf32>,
    } else {
    }
    return
  }
  func.func @transform_0(%arg0: i32, %arg1: i32, %arg2: i32) -> (i32, i32, i32) {
    %c0_i32 = arith.constant 0 : i32
    %c0_i32_0 = arith.constant 0 : i32
    return %arg0, %c0_i32, %arg2 : i32, i32, i32
  }
  func.func @transform_1(%arg0: i32, %arg1: i32, %arg2: i32) -> (i32, i32, i32) {
    %c0_i32 = arith.constant 0 : i32
    return %arg0, %arg2, %arg1 : i32, i32, i32
  }
  func.func @transform_2(%arg0: i32, %arg1: i32, %arg2: i32) -> (i32, i32) {
    %c1_i32 = arith.constant 1 : i32
    %0 = arith.muli %arg0, %c1_i32 : i32
    %1 = arith.addi %0, %arg1 : i32
    %c0_i32 = arith.constant 0 : i32
    %c0_i32_0 = arith.constant 0 : i32
    return %c0_i32, %1 : i32, i32
  }
}

</mosaic_0001>

<llo_original>
// kernel: _lambda_.1
$region0: #{_lambda_.1}
  #allocation0 [shape = 'u32[]', space=smem, size = 0x4, offset = 0x4, fixed_abs, tag = 'smem constant byte address 0x4 - core index']
  #allocation1 [shape = 'u32[144,128]{1,0:T(1,128)}', space=vmem, size = 0x12000, scoped, tag = 'internal scratch']
  #allocation2 [shape = 'f32[4,512]{1,0:T(4,128)}', space=vmem, size = 0x2000, scoped, tag = 'scratch operand']
  %s0 = inlined_call_operand.vmem [shape: f32[2,4,8], index: 0, kind: input, shape index: {}]
  %s1 = inlined_call_operand.vmem [shape: f32[2,8,512], index: 1, kind: input, shape index: {}]
  %s2 = inlined_call_operand.vmem [shape: f32[4,1024], index: 2, kind: output, shape index: {}]
  %s3 = sld [smem:[#allocation0]]
  $region49: #{_lambda_.1} parent=0
    _
  %s5 = ssub.s32 1, %s3
  %s6 = scalar_select 0, %s5, %s3
  loop: start=0, step=1, limit=4
  $region2: #{_lambda_.1} parent=0 // loop_pre_header
    _
  $region3: #{_lambda_.1} parent=0 // loop_header
    %s8 = sphi 0, %s12
    %p9 = scmp.ge.s32.totalorder %s8, 4
    %s15 = sphi 0, %s34
    %s16 = sphi 0, %s30
    %s17 = sphi 0, %s26
    %s18 = sphi 0, %s15
    %s19 = sphi 0, %s16
    %s20 = sphi 0, %s17
    %s21 = sphi 0, %s18
    %s22 = sphi 0, %s19
    %s23 = sphi 0, %s20
    %s39 = sphi 0, %s41
    %s42 = sphi 0, %s39
    %s43 = sphi 0, %s42
    %s59 = sphi 0, %s43
    %s69 = sphi 0, %s71
    %s72 = sphi 0, %s69
    %s73 = sphi 0, %s72
    %s89 = sphi 0, %s73
    %s97 = sphi 0, %s99
    %s100 = sphi 0, %s97
    %s101 = sphi 0, %s100
    %s117 = sphi 0, %s101
  $region4: #{_lambda_.1} parent=0 // loop_header_branch
    %11 = sbr.rel (%p9) target = $region8
  $region5: #{_lambda_.1} parent=0 // loop_body
    %s13 = ssub.s32 %s8, 1
    %s14 = ssub.s32 %s8, 2
    %s24 = sadd.s32 1, %s17
    %p25 = scmp.ge.s32.totalorder %s24, 1
    %s26 = scalar_select %p25, 0, %s24
    %s27 = sadd.s32 1, %s16
    %s28 = scalar_select %p25, %s27, %s16
    %p29 = scmp.ge.s32.totalorder %s28, 1
    %s30 = scalar_select %p29, 0, %s28
    %s31 = sadd.s32 1, %s15
    %s32 = scalar_select %p29, %s31, %s15
    %p33 = scmp.ge.s32.totalorder %s32, 2
    %s34 = scalar_select %p33, 0, %s32
    %s35 = ssub.s32 %s15, %s34
    %s36 = ssub.s32 %s17, %s26
    %s37 = sor.u32 %s35, %s36
    %p38 = scmp.eq.s32.totalorder %s37, 0
    %s40 = sadd.s32 %s39, 1
    %s41 = scalar_select %p38, %s39, %s40
    %p44 = pneg %p38
    %p45 = scmp.eq.s32.totalorder %s8, 1
    %p46 = por %p44, %p45
    %p47 = scmp.ne.s32.totalorder %s39, %s42
    %p48 = scmp.eq.s32.totalorder %s8, 0
    %p49 = por %p47, %p48
    %p50 = scmp.ne.s32.totalorder %s39, %s42
    %p51 = scmp.eq.s32.totalorder %s13, 1
    %p52 = por %p50, %p51
    %p53 = scmp.ne.s32.totalorder %s42, %s43
    %p54 = scmp.eq.s32.totalorder %s13, 0
    %p55 = por %p53, %p54
    %p56 = scmp.ne.s32.totalorder %s42, %s43
    %p57 = scmp.eq.s32.totalorder %s14, 1
    %p58 = por %p56, %p57
    %p60 = scmp.ne.s32.totalorder %s43, %s59
    %p61 = scmp.eq.s32.totalorder %s14, 0
    %p62 = por %p60, %p61
    %s63 = ssub.s32 %s15, %s34
    %s64 = ssub.s32 %s17, %s26
    %s65 = sor.u32 %s63, %s64
    %s66 = ssub.s32 %s16, %s30
    %s67 = sor.u32 %s65, %s66
    %p68 = scmp.eq.s32.totalorder %s67, 0
    %s70 = sadd.s32 %s69, 1
    %s71 = scalar_select %p68, %s69, %s70
    %p74 = pneg %p68
    %p75 = scmp.eq.s32.totalorder %s8, 1
    %p76 = por %p74, %p75
    %p77 = scmp.ne.s32.totalorder %s69, %s72
    %p78 = scmp.eq.s32.totalorder %s8, 0
    %p79 = por %p77, %p78
    %p80 = scmp.ne.s32.totalorder %s69, %s72
    %p81 = scmp.eq.s32.totalorder %s13, 1
    %p82 = por %p80, %p81
    %p83 = scmp.ne.s32.totalorder %s72, %s73
    %p84 = scmp.eq.s32.totalorder %s13, 0
    %p85 = por %p83, %p84
    %p86 = scmp.ne.s32.totalorder %s72, %s73
    %p87 = scmp.eq.s32.totalorder %s14, 1
    %p88 = por %p86, %p87
    %p90 = scmp.ne.s32.totalorder %s73, %s89
    %p91 = scmp.eq.s32.totalorder %s14, 0
    %p92 = por %p90, %p91
    %s93 = sadd.s32 %s15, %s16
    %s94 = sadd.s32 %s34, %s30
    %s95 = ssub.s32 %s93, %s94
    %p96 = scmp.eq.s32.totalorder %s95, 0
    %s98 = sadd.s32 %s97, 1
    %s99 = scalar_select %p96, %s97, %s98
    %p102 = pneg %p96
    %p103 = scmp.eq.s32.totalorder %s8, 1
    %p104 = por %p102, %p103
    %p105 = scmp.ne.s32.totalorder %s97, %s100
    %p106 = scmp.eq.s32.totalorder %s8, 0
    %p107 = por %p105, %p106
    %p108 = scmp.ne.s32.totalorder %s97, %s100
    %p109 = scmp.eq.s32.totalorder %s13, 1
    %p110 = por %p108, %p109
    %p111 = scmp.ne.s32.totalorder %s100, %s101
    %p112 = scmp.eq.s32.totalorder %s13, 0
    %p113 = por %p111, %p112
    %p114 = scmp.ne.s32.totalorder %s100, %s101
    %p115 = scmp.eq.s32.totalorder %s14, 1
    %p116 = por %p114, %p115
    %p118 = scmp.ne.s32.totalorder %s101, %s117
    %p119 = scmp.eq.s32.totalorder %s14, 0
    %p120 = por %p118, %p119
    %p121 = scmp.le.s32.totalorder 1, %s8
    %p122 = scmp.lt.s32.totalorder %s8, 3
    %p123 = pnand %p121, %p122
    %p124 = pneg %p123
    // Predicated region
    $region9: #{_lambda_.1} parent=5 // pred_check
      _
    $region10: #{_lambda_.1} parent=5 // pred_check_branch
      %126 = sbr.rel (%p123) target = $region12
    $region11: #{_lambda_.1} parent=5 // pred_region
      %s127 = ssub.s32 %s8, 1
    $region12: #{_lambda_.1} parent=5 // pred_fallthru
      _
    %p128 = scmp.lt.s32.totalorder %s8, 2
    // Predicated region
    $region13: #{_lambda_.1} parent=5 // pred_check
      %p129 = pneg %p128
    $region14: #{_lambda_.1} parent=5 // pred_check_branch
      %131 = sbr.rel (%p129) target = $region16
    $region15: #{_lambda_.1} parent=5 // pred_region
      // Predicated region
      $region17: #{_lambda_.1} parent=15 // pred_check
        %p132 = pneg %p49
      $region18: #{_lambda_.1} parent=15 // pred_check_branch
        %134 = sbr.rel (%p132) target = $region20
      $region19: #{_lambda_.1} parent=15 // pred_region
        %p135 = scmp.lt.s32.totalorder %s15, 1
        %s136 = scalar_select %p135, %s15, 1
        %p137 = scmp.lt.s32.totalorder %s17, 0
        %s138 = scalar_select %p137, %s17, 0
        %s139 = sadd.s32 %s138, %s136
        %s140 = smul.addr %s139, 4
        %s141 = scalar_lea.vmem %s0, %s140
      $region20: #{_lambda_.1} parent=15 // pred_fallthru
        _
      // Predicated region
      $region21: #{_lambda_.1} parent=15 // pred_check
        %p142 = pneg %p79
      $region22: #{_lambda_.1} parent=15 // pred_check_branch
        %144 = sbr.rel (%p142) target = $region24
      $region23: #{_lambda_.1} parent=15 // pred_region
        %s145 = smul.u32 4, %s16
        %p146 = scmp.lt.s32.totalorder %s15, 1
        %s147 = scalar_select %p146, %s15, 1
        %p148 = scmp.lt.s32.totalorder %s17, 0
        %s149 = scalar_select %p148, %s17, 0
        %p150 = scmp.lt.s32.totalorder %s145, 3
        %s151 = scalar_select %p150, %s145, 3
        %s152 = smul.addr %s149, 4
        %s153 = sadd.s32 %s151, %s152
        %s154 = smul.addr %s147, 4
        %s155 = sadd.s32 %s153, %s154
        %s156 = smul.addr %s155, 8
        %s157 = scalar_lea.vmem %s1, %s156
        %s158 = smul.u32 4, %s16
      $region24: #{_lambda_.1} parent=15 // pred_fallthru
        _
    $region16: #{_lambda_.1} parent=5 // pred_fallthru
      _
    %p159 = scmp.le.s32.totalorder 1, %s8
    %p160 = scmp.lt.s32.totalorder %s8, 3
    %p161 = pnand %p159, %p160
    %p162 = pneg %p161
    // Predicated region
    $region25: #{_lambda_.1} parent=5 // pred_check
      _
    $region26: #{_lambda_.1} parent=5 // pred_check_branch
      %164 = sbr.rel (%p161) target = $region28
    $region27: #{_lambda_.1} parent=5 // pred_region
      %s165 = ssub.s32 %s8, 1
      %p166 = scmp.lt.s32.totalorder %s18, 1
      %s167 = scalar_select %p166, %s18, 1
      %p168 = scmp.lt.s32.totalorder %s20, 0
      %s169 = scalar_select %p168, %s20, 0
      %s170 = sadd.s32 %s169, %s167
      %s171 = smul.addr %s170, 4
      %s172 = scalar_lea.vmem %s0, %s171
      %p173 = pneg %p55
      %p174 = pneg %p52
      %s175 = smul.u32 4, %s19
      %p176 = scmp.lt.s32.totalorder %s18, 1
      %s177 = scalar_select %p176, %s18, 1
      %p178 = scmp.lt.s32.totalorder %s20, 0
      %s179 = scalar_select %p178, %s20, 0
      %p180 = scmp.lt.s32.totalorder %s175, 3
      %s181 = scalar_select %p180, %s175, 3
      %s182 = smul.addr %s179, 4
      %s183 = sadd.s32 %s181, %s182
      %s184 = smul.addr %s177, 4
      %s185 = sadd.s32 %s183, %s184
      %s186 = smul.addr %s185, 8
      %s187 = scalar_lea.vmem %s1, %s186
      %p188 = pneg %p85
      %p189 = pneg %p82
      %p190 = pneg %p113
      %p191 = pneg %p110
      %s192 = sadd.s32 %s18, %s19
      %s193 = smul.u32 4, %s192
      %p194 = scmp.lt.s32.totalorder %s193, 7
      %s195 = scalar_select %p194, %s193, 7
      %s196 = smul.addr %s195, 4
      %s197 = scalar_lea.vmem %s2, %s196
      %p198 = scmp.lt.s32.totalorder %s18, 1
      %s199 = scalar_select %p198, %s18, 1
      %p200 = scmp.lt.s32.totalorder %s20, 0
      %s201 = scalar_select %p200, %s20, 0
      %s202 = sadd.s32 %s201, %s199
      %s203 = smul.addr %s202, 4
      %s204 = scalar_lea.vmem %s0, %s203
      %s205 = smul.u32 4, %s19
      %p206 = scmp.lt.s32.totalorder %s18, 1
      %s207 = scalar_select %p206, %s18, 1
      %p208 = scmp.lt.s32.totalorder %s20, 0
      %s209 = scalar_select %p208, %s20, 0
      %p210 = scmp.lt.s32.totalorder %s205, 3
      %s211 = scalar_select %p210, %s205, 3
      %s212 = smul.addr %s209, 4
      %s213 = sadd.s32 %s211, %s212
      %s214 = smul.addr %s207, 4
      %s215 = sadd.s32 %s213, %s214
      %s216 = smul.addr %s215, 8
      %s217 = scalar_lea.vmem %s1, %s216
      %s218 = smul.u32 4, %s19
      %s219 = sadd.s32 %s18, %s19
      %s220 = smul.u32 4, %s219
      %p221 = scmp.lt.s32.totalorder %s220, 7
      %s222 = scalar_select %p221, %s220, 7
      %s223 = smul.addr %s222, 4
      %s224 = scalar_lea.vmem %s2, %s223
      %s225 = sadd.s32 %s18, %s19
      %s226 = smul.u32 4, %s225
      %p227 = scmp.eq.s32.totalorder %s20, 0
      // Predicated region
      $region29: #{_lambda_.1} parent=27 // pred_check
        %p228 = pneg %p227
      $region30: #{_lambda_.1} parent=27 // pred_check_branch
        %230 = sbr.rel (%p228) target = $region32
      $region31: #{_lambda_.1} parent=27 // pred_region
        %231 = vst [vmem:[#allocation2] sm:$0xff] 0.0
        %232 = vst [vmem:[#allocation2 + $0x8] sm:$0xff] 0.0
      $region32: #{_lambda_.1} parent=27 // pred_fallthru
        _
      %v233 = vld [vmem:[#allocation2] sm:$0xff]
      %v234 = vld [vmem:[#allocation2 + $0x8] sm:$0xff]
      %v235 = vld [vmem:[%s204] sm:$0xf]
      %v236 = vld [vmem:[%s217] sm:$0xff]
      %v237 = vld [vmem:[%s217 + $0x8] sm:$0xff]
      %v238 = vld [vmem:[%s217 + $0x10] sm:$0xff]
      %v239 = vld [vmem:[%s217 + $0x18] sm:$0xff]
      %vm240 = vcmask 64512
      %v242 = vsel %vm240, %v235, 0
      %v244 = vand.u32 %v237, 4294901760
      %245 = vmatprep.subr.mxu0 %v244
      %v246 = vand.u32 %v236, 4294901760
      %247 = vmatpush1.msra.mxu0 %v246
      %248 = vmatprep.subr.mxu0 0.0
      %249 = vmatpush1.msra.mxu0 0.0
      %250 = vmatprep.subr.mxu0 0.0
      %251 = vmatpush1.msra.mxu0 0.0
      %252 = vmatprep.subr.mxu0 0.0
      %253 = vmatpush1.msra.mxu0 0.0
      %254 = vmatprep.subr.mxu0 0.0
      %255 = vmatpush1.msra.mxu0 0.0
      %256 = vmatprep.subr.mxu0 0.0
      %257 = vmatpush1.msra.mxu0 0.0
      %258 = vmatprep.subr.mxu0 0.0
      %259 = vmatpush1.msra.mxu0 0.0
      %260 = vmatprep.subr.mxu0 0.0
      %261 = vmatpush1.msra.mxu0 0.0
      %262 = vmatprep.subr.mxu0 0.0
      %263 = vmatpush1.msra.mxu0 0.0
      %264 = vmatprep.subr.mxu0 0.0
      %265 = vmatpush1.msra.mxu0 0.0
      %266 = vmatprep.subr.mxu0 0.0
      %267 = vmatpush1.msra.mxu0 0.0
      %268 = vmatprep.subr.mxu0 0.0
      %269 = vmatpush1.msra.mxu0 0.0
      %270 = vmatprep.subr.mxu0 0.0
      %271 = vmatpush1.msra.mxu0 0.0
      %272 = vmatprep.subr.mxu0 0.0
      %273 = vmatpush1.msra.mxu0 0.0
      %274 = vmatprep.subr.mxu0 0.0
      %275 = vmatpush1.msra.mxu0 0.0
      %276 = vmatprep.subr.mxu0 0.0
      %277 = vmatpush1.msra.mxu0 0.0
      %278 = vmatprep.subr.mxu0 0.0
      %279 = vmatpush1.msra.mxu0 0.0
      %280 = vmatprep.subr.mxu0 0.0
      %281 = vmatpush1.msra.mxu0 0.0
      %282 = vmatprep.subr.mxu0 0.0
      %283 = vmatpush1.msra.mxu0 0.0
      %284 = vmatprep.subr.mxu0 0.0
      %285 = vmatpush1.msra.mxu0 0.0
      %286 = vmatprep.subr.mxu0 0.0
      %287 = vmatpush1.msra.mxu0 0.0
      %288 = vmatprep.subr.mxu0 0.0
      %289 = vmatpush1.msra.mxu0 0.0
      %290 = vmatprep.subr.mxu0 0.0
      %291 = vmatpush1.msra.mxu0 0.0
      %292 = vmatprep.subr.mxu0 0.0
      %293 = vmatpush1.msra.mxu0 0.0
      %294 = vmatprep.subr.mxu0 0.0
      %295 = vmatpush1.msra.mxu0 0.0
      %296 = vmatprep.subr.mxu0 0.0
      %297 = vmatpush1.msra.mxu0 0.0
      %298 = vmatprep.subr.mxu0 0.0
      %299 = vmatpush1.msra.mxu0 0.0
      %300 = vmatprep.subr.mxu0 0.0
      %301 = vmatpush1.msra.mxu0 0.0
      %302 = vmatprep.subr.mxu0 0.0
      %303 = vmatpush1.msra.mxu0 0.0
      %304 = vmatprep.subr.mxu0 0.0
      %305 = vmatpush1.msra.mxu0 0.0
      %306 = vmatprep.subr.mxu0 0.0
      %307 = vmatpush1.msra.mxu0 0.0
      %308 = vmatprep.subr.mxu0 0.0
      %309 = vmatpush1.msra.mxu0 0.0
      %310 = vmatprep.mubr.f32.mxu0 0.0
      %v311 = vand.u32 %v242, 4294901760
      %v312 = vsub.f32 %v242, %v311
      %v313 = vand.u32 %v312, 4294901760
      %v314 = vsub.f32 %v312, %v313
      %v315 = vand.u32 %v314, 4294901760
      %316 = vmatmul.mubr.f32.gmra.mrb[0].mxu0 %v315
      %v317 = vpop.f32.mrb[0].mxu0
      %v318 = vadd.f32 0.0, %v317
      %v319 = vpop.f32.mrb[0].mxu0
      %v320 = vadd.f32 0.0, %v319
      %321 = vdwg.mxu0
      %v322 = vand.u32 %v237, 4294901760
      %v323 = vsub.f32 %v237, %v322
      %v324 = vand.u32 %v323, 4294901760
      %v325 = vsub.f32 %v323, %v324
      %v326 = vand.u32 %v325, 4294901760
      %327 = vmatprep.subr.mxu0 %v326
      %v328 = vand.u32 %v236, 4294901760
      %v329 = vsub.f32 %v236, %v328
      %v330 = vand.u32 %v329, 4294901760
      %v331 = vsub.f32 %v329, %v330
      %v332 = vand.u32 %v331, 4294901760
      %333 = vmatpush1.msra.mxu0 %v332
      %334 = vmatprep.subr.mxu0 0.0
      %335 = vmatpush1.msra.mxu0 0.0
      %336 = vmatprep.subr.mxu0 0.0
      %337 = vmatpush1.msra.mxu0 0.0
      %338 = vmatprep.subr.mxu0 0.0
      %339 = vmatpush1.msra.mxu0 0.0
      %340 = vmatprep.subr.mxu0 0.0
      %341 = vmatpush1.msra.mxu0 0.0
      %342 = vmatprep.subr.mxu0 0.0
      %343 = vmatpush1.msra.mxu0 0.0
      %344 = vmatprep.subr.mxu0 0.0
      %345 = vmatpush1.msra.mxu0 0.0
      %346 = vmatprep.subr.mxu0 0.0
      %347 = vmatpush1.msra.mxu0 0.0
      %348 = vmatprep.subr.mxu0 0.0
      %349 = vmatpush1.msra.mxu0 0.0
      %350 = vmatprep.subr.mxu0 0.0
      %351 = vmatpush1.msra.mxu0 0.0
      %352 = vmatprep.subr.mxu0 0.0
      %353 = vmatpush1.msra.mxu0 0.0
      %354 = vmatprep.subr.mxu0 0.0
      %355 = vmatpush1.msra.mxu0 0.0
      %356 = vmatprep.subr.mxu0 0.0
      %357 = vmatpush1.msra.mxu0 0.0
      %358 = vmatprep.subr.mxu0 0.0
      %359 = vmatpush1.msra.mxu0 0.0
      %360 = vmatprep.subr.mxu0 0.0
      %361 = vmatpush1.msra.mxu0 0.0
      %362 = vmatprep.subr.mxu0 0.0
      %363 = vmatpush1.msra.mxu0 0.0
      %364 = vmatprep.subr.mxu0 0.0
      %365 = vmatpush1.msra.mxu0 0.0
      %366 = vmatprep.subr.mxu0 0.0
      %367 = vmatpush1.msra.mxu0 0.0
      %368 = vmatprep.subr.mxu0 0.0
      %369 = vmatpush1.msra.mxu0 0.0
      %370 = vmatprep.subr.mxu0 0.0
      %371 = vmatpush1.msra.mxu0 0.0
      %372 = vmatprep.subr.mxu0 0.0
      %373 = vmatpush1.msra.mxu0 0.0
      %374 = vmatprep.subr.mxu0 0.0
      %375 = vmatpush1.msra.mxu0 0.0
      %376 = vmatprep.subr.mxu0 0.0
      %377 = vmatpush1.msra.mxu0 0.0
      %378 = vmatprep.subr.mxu0 0.0
      %379 = vmatpush1.msra.mxu0 0.0
      %380 = vmatprep.subr.mxu0 0.0
      %381 = vmatpush1.msra.mxu0 0.0
      %382 = vmatprep.subr.mxu0 0.0
      %383 = vmatpush1.msra.mxu0 0.0
      %384 = vmatprep.subr.mxu0 0.0
      %385 = vmatpush1.msra.mxu0 0.0
      %386 = vmatprep.subr.mxu0 0.0
      %387 = vmatpush1.msra.mxu0 0.0
      %388 = vmatprep.subr.mxu0 0.0
      %389 = vmatpush1.msra.mxu0 0.0
      %390 = vmatprep.subr.mxu0 0.0
      %391 = vmatpush1.msra.mxu0 0.0
      %392 = vmatprep.subr.mxu0 0.0
      %393 = vmatpush1.msra.mxu0 0.0
      %394 = vmatprep.subr.mxu0 0.0
      %395 = vmatpush1.msra.mxu0 0.0
      %396 = vmatprep.mubr.f32.mxu0 0.0
      %v397 = vand.u32 %v242, 4294901760
      %398 = vmatmul.mubr.f32.gmra.mrb[0].mxu0 %v397
      %v399 = vpop.f32.mrb[0].mxu0
      %v400 = vadd.f32 %v318, %v399
      %v401 = vpop.f32.mrb[0].mxu0
      %v402 = vadd.f32 %v320, %v401
      %403 = vdwg.mxu0
      %v404 = vand.u32 %v237, 4294901760
      %v405 = vsub.f32 %v237, %v404
      %406 = vmatprep.subr.mxu0 %v405
      %v407 = vand.u32 %v236, 4294901760
      %v408 = vsub.f32 %v236, %v407
      %409 = vmatpush1.msra.mxu0 %v408
      %410 = vmatprep.subr.mxu0 0.0
      %411 = vmatpush1.msra.mxu0 0.0
      %412 = vmatprep.subr.mxu0 0.0
      %413 = vmatpush1.msra.mxu0 0.0
      %414 = vmatprep.subr.mxu0 0.0
      %415 = vmatpush1.msra.mxu0 0.0
      %416 = vmatprep.subr.mxu0 0.0
      %417 = vmatpush1.msra.mxu0 0.0
      %418 = vmatprep.subr.mxu0 0.0
      %419 = vmatpush1.msra.mxu0 0.0
      %420 = vmatprep.subr.mxu0 0.0
      %421 = vmatpush1.msra.mxu0 0.0
      %422 = vmatprep.subr.mxu0 0.0
      %423 = vmatpush1.msra.mxu0 0.0
      %424 = vmatprep.subr.mxu0 0.0
      %425 = vmatpush1.msra.mxu0 0.0
      %426 = vmatprep.subr.mxu0 0.0
      %427 = vmatpush1.msra.mxu0 0.0
      %428 = vmatprep.subr.mxu0 0.0
      %429 = vmatpush1.msra.mxu0 0.0
      %430 = vmatprep.subr.mxu0 0.0
      %431 = vmatpush1.msra.mxu0 0.0
      %432 = vmatprep.subr.mxu0 0.0
      %433 = vmatpush1.msra.mxu0 0.0
      %434 = vmatprep.subr.mxu0 0.0
      %435 = vmatpush1.msra.mxu0 0.0
      %436 = vmatprep.subr.mxu0 0.0
      %437 = vmatpush1.msra.mxu0 0.0
      %438 = vmatprep.subr.mxu0 0.0
      %439 = vmatpush1.msra.mxu0 0.0
      %440 = vmatprep.subr.mxu0 0.0
      %441 = vmatpush1.msra.mxu0 0.0
      %442 = vmatprep.subr.mxu0 0.0
      %443 = vmatpush1.msra.mxu0 0.0
      %444 = vmatprep.subr.mxu0 0.0
      %445 = vmatpush1.msra.mxu0 0.0
      %446 = vmatprep.subr.mxu0 0.0
      %447 = vmatpush1.msra.mxu0 0.0
      %448 = vmatprep.subr.mxu0 0.0
      %449 = vmatpush1.msra.mxu0 0.0
      %450 = vmatprep.subr.mxu0 0.0
      %451 = vmatpush1.msra.mxu0 0.0
      %452 = vmatprep.subr.mxu0 0.0
      %453 = vmatpush1.msra.mxu0 0.0
      %454 = vmatprep.subr.mxu0 0.0
      %455 = vmatpush1.msra.mxu0 0.0
      %456 = vmatprep.subr.mxu0 0.0
      %457 = vmatpush1.msra.mxu0 0.0
      %458 = vmatprep.subr.mxu0 0.0
      %459 = vmatpush1.msra.mxu0 0.0
      %460 = vmatprep.subr.mxu0 0.0
      %461 = vmatpush1.msra.mxu0 0.0
      %462 = vmatprep.subr.mxu0 0.0
      %463 = vmatpush1.msra.mxu0 0.0
      %464 = vmatprep.subr.mxu0 0.0
      %465 = vmatpush1.msra.mxu0 0.0
      %466 = vmatprep.subr.mxu0 0.0
      %467 = vmatpush1.msra.mxu0 0.0
      %468 = vmatprep.subr.mxu0 0.0
      %469 = vmatpush1.msra.mxu0 0.0
      %470 = vmatprep.subr.mxu0 0.0
      %471 = vmatpush1.msra.mxu0 0.0
      %472 = vmatprep.mubr.f32.mxu0 0.0
      %v473 = vand.u32 %v242, 4294901760
      %v474 = vsub.f32 %v242, %v473
      %475 = vmatmul.mubr.f32.gmra.mrb[0].mxu0 %v474
      %v476 = vpop.f32.mrb[0].mxu0
      %v477 = vadd.f32 %v400, %v476
      %v478 = vpop.f32.mrb[0].mxu0
      %v479 = vadd.f32 %v402, %v478
      %480 = vdwg.mxu0
      %v481 = vand.u32 %v237, 4294901760
      %482 = vmatprep.subr.mxu0 %v481
      %v483 = vand.u32 %v236, 4294901760
      %484 = vmatpush1.msra.mxu0 %v483
      %485 = vmatprep.subr.mxu0 0.0
      %486 = vmatpush1.msra.mxu0 0.0
      %487 = vmatprep.subr.mxu0 0.0
      %488 = vmatpush1.msra.mxu0 0.0
      %489 = vmatprep.subr.mxu0 0.0
      %490 = vmatpush1.msra.mxu0 0.0
      %491 = vmatprep.subr.mxu0 0.0
      %492 = vmatpush1.msra.mxu0 0.0
      %493 = vmatprep.subr.mxu0 0.0
      %494 = vmatpush1.msra.mxu0 0.0
      %495 = vmatprep.subr.mxu0 0.0
      %496 = vmatpush1.msra.mxu0 0.0
      %497 = vmatprep.subr.mxu0 0.0
      %498 = vmatpush1.msra.mxu0 0.0
      %499 = vmatprep.subr.mxu0 0.0
      %500 = vmatpush1.msra.mxu0 0.0
      %501 = vmatprep.subr.mxu0 0.0
      %502 = vmatpush1.msra.mxu0 0.0
      %503 = vmatprep.subr.mxu0 0.0
      %504 = vmatpush1.msra.mxu0 0.0
      %505 = vmatprep.subr.mxu0 0.0
      %506 = vmatpush1.msra.mxu0 0.0
      %507 = vmatprep.subr.mxu0 0.0
      %508 = vmatpush1.msra.mxu0 0.0
      %509 = vmatprep.subr.mxu0 0.0
      %510 = vmatpush1.msra.mxu0 0.0
      %511 = vmatprep.subr.mxu0 0.0
      %512 = vmatpush1.msra.mxu0 0.0
      %513 = vmatprep.subr.mxu0 0.0
      %514 = vmatpush1.msra.mxu0 0.0
      %515 = vmatprep.subr.mxu0 0.0
      %516 = vmatpush1.msra.mxu0 0.0
      %517 = vmatprep.subr.mxu0 0.0
      %518 = vmatpush1.msra.mxu0 0.0
      %519 = vmatprep.subr.mxu0 0.0
      %520 = vmatpush1.msra.mxu0 0.0
      %521 = vmatprep.subr.mxu0 0.0
      %522 = vmatpush1.msra.mxu0 0.0
      %523 = vmatprep.subr.mxu0 0.0
      %524 = vmatpush1.msra.mxu0 0.0
      %525 = vmatprep.subr.mxu0 0.0
      %526 = vmatpush1.msra.mxu0 0.0
      %527 = vmatprep.subr.mxu0 0.0
      %528 = vmatpush1.msra.mxu0 0.0
      %529 = vmatprep.subr.mxu0 0.0
      %530 = vmatpush1.msra.mxu0 0.0
      %531 = vmatprep.subr.mxu0 0.0
      %532 = vmatpush1.msra.mxu0 0.0
      %533 = vmatprep.subr.mxu0 0.0
      %534 = vmatpush1.msra.mxu0 0.0
      %535 = vmatprep.subr.mxu0 0.0
      %536 = vmatpush1.msra.mxu0 0.0
      %537 = vmatprep.subr.mxu0 0.0
      %538 = vmatpush1.msra.mxu0 0.0
      %539 = vmatprep.subr.mxu0 0.0
      %540 = vmatpush1.msra.mxu0 0.0
      %541 = vmatprep.subr.mxu0 0.0
      %542 = vmatpush1.msra.mxu0 0.0
      %543 = vmatprep.subr.mxu0 0.0
      %544 = vmatpush1.msra.mxu0 0.0
      %545 = vmatprep.subr.mxu0 0.0
      %546 = vmatpush1.msra.mxu0 0.0
      %547 = vmatprep.mubr.f32.mxu0 0.0
      %v548 = vand.u32 %v242, 4294901760
      %v549 = vsub.f32 %v242, %v548
      %v550 = vand.u32 %v549, 4294901760
      %551 = vmatmul.mubr.f32.gmra.mrb[0].mxu0 %v550
      %v552 = vpop.f32.mrb[0].mxu0
      %v553 = vadd.f32 %v477, %v552
      %v554 = vpop.f32.mrb[0].mxu0
      %v555 = vadd.f32 %v479, %v554
      %556 = vdwg.mxu0
      %v557 = vand.u32 %v237, 4294901760
      %v558 = vsub.f32 %v237, %v557
      %v559 = vand.u32 %v558, 4294901760
      %560 = vmatprep.subr.mxu0 %v559
      %v561 = vand.u32 %v236, 4294901760
      %v562 = vsub.f32 %v236, %v561
      %v563 = vand.u32 %v562, 4294901760
      %564 = vmatpush1.msra.mxu0 %v563
      %565 = vmatprep.subr.mxu0 0.0
      %566 = vmatpush1.msra.mxu0 0.0
      %567 = vmatprep.subr.mxu0 0.0
      %568 = vmatpush1.msra.mxu0 0.0
      %569 = vmatprep.subr.mxu0 0.0
      %570 = vmatpush1.msra.mxu0 0.0
      %571 = vmatprep.subr.mxu0 0.0
      %572 = vmatpush1.msra.mxu0 0.0
      %573 = vmatprep.subr.mxu0 0.0
      %574 = vmatpush1.msra.mxu0 0.0
      %575 = vmatprep.subr.mxu0 0.0
      %576 = vmatpush1.msra.mxu0 0.0
      %577 = vmatprep.subr.mxu0 0.0
      %578 = vmatpush1.msra.mxu0 0.0
      %579 = vmatprep.subr.mxu0 0.0
      %580 = vmatpush1.msra.mxu0 0.0
      %581 = vmatprep.subr.mxu0 0.0
      %582 = vmatpush1.msra.mxu0 0.0
      %583 = vmatprep.subr.mxu0 0.0
      %584 = vmatpush1.msra.mxu0 0.0
      %585 = vmatprep.subr.mxu0 0.0
      %586 = vmatpush1.msra.mxu0 0.0
      %587 = vmatprep.subr.mxu0 0.0
      %588 = vmatpush1.msra.mxu0 0.0
      %589 = vmatprep.subr.mxu0 0.0
      %590 = vmatpush1.msra.mxu0 0.0
      %591 = vmatprep.subr.mxu0 0.0
      %592 = vmatpush1.msra.mxu0 0.0
      %593 = vmatprep.subr.mxu0 0.0
      %594 = vmatpush1.msra.mxu0 0.0
      %595 = vmatprep.subr.mxu0 0.0
      %596 = vmatpush1.msra.mxu0 0.0
      %597 = vmatprep.subr.mxu0 0.0
      %598 = vmatpush1.msra.mxu0 0.0
      %599 = vmatprep.subr.mxu0 0.0
      %600 = vmatpush1.msra.mxu0 0.0
      %601 = vmatprep.subr.mxu0 0.0
      %602 = vmatpush1.msra.mxu0 0.0
      %603 = vmatprep.subr.mxu0 0.0
      %604 = vmatpush1.msra.mxu0 0.0
      %605 = vmatprep.subr.mxu0 0.0
      %606 = vmatpush1.msra.mxu0 0.0
      %607 = vmatprep.subr.mxu0 0.0
      %608 = vmatpush1.msra.mxu0 0.0
      %609 = vmatprep.subr.mxu0 0.0
      %610 = vmatpush1.msra.mxu0 0.0
      %611 = vmatprep.subr.mxu0 0.0
      %612 = vmatpush1.msra.mxu0 0.0
      %613 = vmatprep.subr.mxu0 0.0
      %614 = vmatpush1.msra.mxu0 0.0
      %615 = vmatprep.subr.mxu0 0.0
      %616 = vmatpush1.msra.mxu0 0.0
      %617 = vmatprep.subr.mxu0 0.0
      %618 = vmatpush1.msra.mxu0 0.0
      %619 = vmatprep.subr.mxu0 0.0
      %620 = vmatpush1.msra.mxu0 0.0
      %621 = vmatprep.subr.mxu0 0.0
      %622 = vmatpush1.msra.mxu0 0.0
      %623 = vmatprep.subr.mxu0 0.0
      %624 = vmatpush1.msra.mxu0 0.0
      %625 = vmatprep.subr.mxu0 0.0
      %626 = vmatpush1.msra.mxu0 0.0
      %627 = vmatprep.mubr.f32.mxu0 0.0
      %v628 = vand.u32 %v242, 4294901760
      %629 = vmatmul.mubr.f32.gmra.mrb[0].mxu0 %v628
      %v630 = vpop.f32.mrb[0].mxu0
      %v631 = vadd.f32 %v553, %v630
      %v632 = vpop.f32.mrb[0].mxu0
      %v633 = vadd.f32 %v555, %v632
      %634 = vdwg.mxu0
      %v635 = vand.u32 %v237, 4294901760
      %636 = vmatprep.subr.mxu0 %v635
      %v637 = vand.u32 %v236, 4294901760
      %638 = vmatpush1.msra.mxu0 %v637
      %639 = vmatprep.subr.mxu0 0.0
      %640 = vmatpush1.msra.mxu0 0.0
      %641 = vmatprep.subr.mxu0 0.0
      %642 = vmatpush1.msra.mxu0 0.0
      %643 = vmatprep.subr.mxu0 0.0
      %644 = vmatpush1.msra.mxu0 0.0
      %645 = vmatprep.subr.mxu0 0.0
      %646 = vmatpush1.msra.mxu0 0.0
      %647 = vmatprep.subr.mxu0 0.0
      %648 = vmatpush1.msra.mxu0 0.0
      %649 = vmatprep.subr.mxu0 0.0
      %650 = vmatpush1.msra.mxu0 0.0
      %651 = vmatprep.subr.mxu0 0.0
      %652 = vmatpush1.msra.mxu0 0.0
      %653 = vmatprep.subr.mxu0 0.0
      %654 = vmatpush1.msra.mxu0 0.0
      %655 = vmatprep.subr.mxu0 0.0
      %656 = vmatpush1.msra.mxu0 0.0
      %657 = vmatprep.subr.mxu0 0.0
      %658 = vmatpush1.msra.mxu0 0.0
      %659 = vmatprep.subr.mxu0 0.0
      %660 = vmatpush1.msra.mxu0 0.0
      %661 = vmatprep.subr.mxu0 0.0
      %662 = vmatpush1.msra.mxu0 0.0
      %663 = vmatprep.subr.mxu0 0.0
      %664 = vmatpush1.msra.mxu0 0.0
      %665 = vmatprep.subr.mxu0 0.0
      %666 = vmatpush1.msra.mxu0 0.0
      %667 = vmatprep.subr.mxu0 0.0
      %668 = vmatpush1.msra.mxu0 0.0
      %669 = vmatprep.subr.mxu0 0.0
      %670 = vmatpush1.msra.mxu0 0.0
      %671 = vmatprep.subr.mxu0 0.0
      %672 = vmatpush1.msra.mxu0 0.0
      %673 = vmatprep.subr.mxu0 0.0
      %674 = vmatpush1.msra.mxu0 0.0
      %675 = vmatprep.subr.mxu0 0.0
      %676 = vmatpush1.msra.mxu0 0.0
      %677 = vmatprep.subr.mxu0 0.0
      %678 = vmatpush1.msra.mxu0 0.0
      %679 = vmatprep.subr.mxu0 0.0
      %680 = vmatpush1.msra.mxu0 0.0
      %681 = vmatprep.subr.mxu0 0.0
      %682 = vmatpush1.msra.mxu0 0.0
      %683 = vmatprep.subr.mxu0 0.0
      %684 = vmatpush1.msra.mxu0 0.0
      %685 = vmatprep.subr.mxu0 0.0
      %686 = vmatpush1.msra.mxu0 0.0
      %687 = vmatprep.subr.mxu0 0.0
      %688 = vmatpush1.msra.mxu0 0.0
      %689 = vmatprep.subr.mxu0 0.0
      %690 = vmatpush1.msra.mxu0 0.0
      %691 = vmatprep.subr.mxu0 0.0
      %692 = vmatpush1.msra.mxu0 0.0
      %693 = vmatprep.subr.mxu0 0.0
      %694 = vmatpush1.msra.mxu0 0.0
      %695 = vmatprep.subr.mxu0 0.0
      %696 = vmatpush1.msra.mxu0 0.0
      %697 = vmatprep.subr.mxu0 0.0
      %698 = vmatpush1.msra.mxu0 0.0
      %699 = vmatprep.subr.mxu0 0.0
      %700 = vmatpush1.msra.mxu0 0.0
      %701 = vmatprep.mubr.f32.mxu0 0.0
      %v702 = vand.u32 %v242, 4294901760
      %703 = vmatmul.mubr.f32.gmra.mrb[0].mxu0 %v702
      %v704 = vpop.f32.mrb[0].mxu0
      %v705 = vadd.f32 %v631, %v704
      %v706 = vpop.f32.mrb[0].mxu0
      %v707 = vadd.f32 %v633, %v706
      %708 = vdwg.mxu0
      %v709 = vand.u32 %v239, 4294901760
      %710 = vmatprep.subr.mxu0 %v709
      %v711 = vand.u32 %v238, 4294901760
      %712 = vmatpush1.msra.mxu0 %v711
      %713 = vmatprep.subr.mxu0 0.0
      %714 = vmatpush1.msra.mxu0 0.0
      %715 = vmatprep.subr.mxu0 0.0
      %716 = vmatpush1.msra.mxu0 0.0
      %717 = vmatprep.subr.mxu0 0.0
      %718 = vmatpush1.msra.mxu0 0.0
      %719 = vmatprep.subr.mxu0 0.0
      %720 = vmatpush1.msra.mxu0 0.0
      %721 = vmatprep.subr.mxu0 0.0
      %722 = vmatpush1.msra.mxu0 0.0
      %723 = vmatprep.subr.mxu0 0.0
      %724 = vmatpush1.msra.mxu0 0.0
      %725 = vmatprep.subr.mxu0 0.0
      %726 = vmatpush1.msra.mxu0 0.0
      %727 = vmatprep.subr.mxu0 0.0
      %728 = vmatpush1.msra.mxu0 0.0
      %729 = vmatprep.subr.mxu0 0.0
      %730 = vmatpush1.msra.mxu0 0.0
      %731 = vmatprep.subr.mxu0 0.0
      %732 = vmatpush1.msra.mxu0 0.0
      %733 = vmatprep.subr.mxu0 0.0
      %734 = vmatpush1.msra.mxu0 0.0
      %735 = vmatprep.subr.mxu0 0.0
      %736 = vmatpush1.msra.mxu0 0.0
      %737 = vmatprep.subr.mxu0 0.0
      %738 = vmatpush1.msra.mxu0 0.0
      %739 = vmatprep.subr.mxu0 0.0
      %740 = vmatpush1.msra.mxu0 0.0
      %741 = vmatprep.subr.mxu0 0.0
      %742 = vmatpush1.msra.mxu0 0.0
      %743 = vmatprep.subr.mxu0 0.0
      %744 = vmatpush1.msra.mxu0 0.0
      %745 = vmatprep.subr.mxu0 0.0
      %746 = vmatpush1.msra.mxu0 0.0
      %747 = vmatprep.subr.mxu0 0.0
      %748 = vmatpush1.msra.mxu0 0.0
      %749 = vmatprep.subr.mxu0 0.0
      %750 = vmatpush1.msra.mxu0 0.0
      %751 = vmatprep.subr.mxu0 0.0
      %752 = vmatpush1.msra.mxu0 0.0
      %753 = vmatprep.subr.mxu0 0.0
      %754 = vmatpush1.msra.mxu0 0.0
      %755 = vmatprep.subr.mxu0 0.0
      %756 = vmatpush1.msra.mxu0 0.0
      %757 = vmatprep.subr.mxu0 0.0
      %758 = vmatpush1.msra.mxu0 0.0
      %759 = vmatprep.subr.mxu0 0.0
      %760 = vmatpush1.msra.mxu0 0.0
      %761 = vmatprep.subr.mxu0 0.0
      %762 = vmatpush1.msra.mxu0 0.0
      %763 = vmatprep.subr.mxu0 0.0
      %764 = vmatpush1.msra.mxu0 0.0
      %765 = vmatprep.subr.mxu0 0.0
      %766 = vmatpush1.msra.mxu0 0.0
      %767 = vmatprep.subr.mxu0 0.0
      %768 = vmatpush1.msra.mxu0 0.0
      %769 = vmatprep.subr.mxu0 0.0
      %770 = vmatpush1.msra.mxu0 0.0
      %771 = vmatprep.subr.mxu0 0.0
      %772 = vmatpush1.msra.mxu0 0.0
      %773 = vmatprep.subr.mxu0 0.0
      %774 = vmatpush1.msra.mxu0 0.0
      %775 = vmatprep.mubr.f32.mxu0 0.0
      %v776 = vand.u32 %v242, 4294901760
      %v777 = vsub.f32 %v242, %v776
      %v778 = vand.u32 %v777, 4294901760
      %v779 = vsub.f32 %v777, %v778
      %v780 = vand.u32 %v779, 4294901760
      %781 = vmatmul.mubr.f32.gmra.mrb[0].mxu0 %v780
      %v782 = vpop.f32.mrb[0].mxu0
      %v783 = vadd.f32 0.0, %v782
      %v784 = vpop.f32.mrb[0].mxu0
      %v785 = vadd.f32 0.0, %v784
      %786 = vdwg.mxu0
      %v787 = vand.u32 %v239, 4294901760
      %v788 = vsub.f32 %v239, %v787
      %v789 = vand.u32 %v788, 4294901760
      %v790 = vsub.f32 %v788, %v789
      %v791 = vand.u32 %v790, 4294901760
      %792 = vmatprep.subr.mxu0 %v791
      %v793 = vand.u32 %v238, 4294901760
      %v794 = vsub.f32 %v238, %v793
      %v795 = vand.u32 %v794, 4294901760
      %v796 = vsub.f32 %v794, %v795
      %v797 = vand.u32 %v796, 4294901760
      %798 = vmatpush1.msra.mxu0 %v797
      %799 = vmatprep.subr.mxu0 0.0
      %800 = vmatpush1.msra.mxu0 0.0
      %801 = vmatprep.subr.mxu0 0.0
      %802 = vmatpush1.msra.mxu0 0.0
      %803 = vmatprep.subr.mxu0 0.0
      %804 = vmatpush1.msra.mxu0 0.0
      %805 = vmatprep.subr.mxu0 0.0
      %806 = vmatpush1.msra.mxu0 0.0
      %807 = vmatprep.subr.mxu0 0.0
      %808 = vmatpush1.msra.mxu0 0.0
      %809 = vmatprep.subr.mxu0 0.0
      %810 = vmatpush1.msra.mxu0 0.0
      %811 = vmatprep.subr.mxu0 0.0
      %812 = vmatpush1.msra.mxu0 0.0
      %813 = vmatprep.subr.mxu0 0.0
      %814 = vmatpush1.msra.mxu0 0.0
      %815 = vmatprep.subr.mxu0 0.0
      %816 = vmatpush1.msra.mxu0 0.0
      %817 = vmatprep.subr.mxu0 0.0
      %818 = vmatpush1.msra.mxu0 0.0
      %819 = vmatprep.subr.mxu0 0.0
      %820 = vmatpush1.msra.mxu0 0.0
      %821 = vmatprep.subr.mxu0 0.0
      %822 = vmatpush1.msra.mxu0 0.0
      %823 = vmatprep.subr.mxu0 0.0
      %824 = vmatpush1.msra.mxu0 0.0
      %825 = vmatprep.subr.mxu0 0.0
      %826 = vmatpush1.msra.mxu0 0.0
      %827 = vmatprep.subr.mxu0 0.0
      %828 = vmatpush1.msra.mxu0 0.0
      %829 = vmatprep.subr.mxu0 0.0
      %830 = vmatpush1.msra.mxu0 0.0
      %831 = vmatprep.subr.mxu0 0.0
      %832 = vmatpush1.msra.mxu0 0.0
      %833 = vmatprep.subr.mxu0 0.0
      %834 = vmatpush1.msra.mxu0 0.0
      %835 = vmatprep.subr.mxu0 0.0
      %836 = vmatpush1.msra.mxu0 0.0
      %837 = vmatprep.subr.mxu0 0.0
      %838 = vmatpush1.msra.mxu0 0.0
      %839 = vmatprep.subr.mxu0 0.0
      %840 = vmatpush1.msra.mxu0 0.0
      %841 = vmatprep.subr.mxu0 0.0
      %842 = vmatpush1.msra.mxu0 0.0
      %843 = vmatprep.subr.mxu0 0.0
      %844 = vmatpush1.msra.mxu0 0.0
      %845 = vmatprep.subr.mxu0 0.0
      %846 = vmatpush1.msra.mxu0 0.0
      %847 = vmatprep.subr.mxu0 0.0
      %848 = vmatpush1.msra.mxu0 0.0
      %849 = vmatprep.subr.mxu0 0.0
      %850 = vmatpush1.msra.mxu0 0.0
      %851 = vmatprep.subr.mxu0 0.0
      %852 = vmatpush1.msra.mxu0 0.0
      %853 = vmatprep.subr.mxu0 0.0
      %854 = vmatpush1.msra.mxu0 0.0
      %855 = vmatprep.subr.mxu0 0.0
      %856 = vmatpush1.msra.mxu0 0.0
      %857 = vmatprep.subr.mxu0 0.0
      %858 = vmatpush1.msra.mxu0 0.0
      %859 = vmatprep.subr.mxu0 0.0
      %860 = vmatpush1.msra.mxu0 0.0
      %861 = vmatprep.mubr.f32.mxu0 0.0
      %v862 = vand.u32 %v242, 4294901760
      %863 = vmatmul.mubr.f32.gmra.mrb[0].mxu0 %v862
      %v864 = vpop.f32.mrb[0].mxu0
      %v865 = vadd.f32 %v783, %v864
      %v866 = vpop.f32.mrb[0].mxu0
      %v867 = vadd.f32 %v785, %v866
      %868 = vdwg.mxu0
      %v869 = vand.u32 %v239, 4294901760
      %v870 = vsub.f32 %v239, %v869
      %871 = vmatprep.subr.mxu0 %v870
      %v872 = vand.u32 %v238, 4294901760
      %v873 = vsub.f32 %v238, %v872
      %874 = vmatpush1.msra.mxu0 %v873
      %875 = vmatprep.subr.mxu0 0.0
      %876 = vmatpush1.msra.mxu0 0.0
      %877 = vmatprep.subr.mxu0 0.0
      %878 = vmatpush1.msra.mxu0 0.0
      %879 = vmatprep.subr.mxu0 0.0
      %880 = vmatpush1.msra.mxu0 0.0
      %881 = vmatprep.subr.mxu0 0.0
      %882 = vmatpush1.msra.mxu0 0.0
      %883 = vmatprep.subr.mxu0 0.0
      %884 = vmatpush1.msra.mxu0 0.0
      %885 = vmatprep.subr.mxu0 0.0
      %886 = vmatpush1.msra.mxu0 0.0
      %887 = vmatprep.subr.mxu0 0.0
      %888 = vmatpush1.msra.mxu0 0.0
      %889 = vmatprep.subr.mxu0 0.0
      %890 = vmatpush1.msra.mxu0 0.0
      %891 = vmatprep.subr.mxu0 0.0
      %892 = vmatpush1.msra.mxu0 0.0
      %893 = vmatprep.subr.mxu0 0.0
      %894 = vmatpush1.msra.mxu0 0.0
      %895 = vmatprep.subr.mxu0 0.0
      %896 = vmatpush1.msra.mxu0 0.0
      %897 = vmatprep.subr.mxu0 0.0
      %898 = vmatpush1.msra.mxu0 0.0
      %899 = vmatprep.subr.mxu0 0.0
      %900 = vmatpush1.msra.mxu0 0.0
      %901 = vmatprep.subr.mxu0 0.0
      %902 = vmatpush1.msra.mxu0 0.0
      %903 = vmatprep.subr.mxu0 0.0
      %904 = vmatpush1.msra.mxu0 0.0
      %905 = vmatprep.subr.mxu0 0.0
      %906 = vmatpush1.msra.mxu0 0.0
      %907 = vmatprep.subr.mxu0 0.0
      %908 = vmatpush1.msra.mxu0 0.0
      %909 = vmatprep.subr.mxu0 0.0
      %910 = vmatpush1.msra.mxu0 0.0
      %911 = vmatprep.subr.mxu0 0.0
      %912 = vmatpush1.msra.mxu0 0.0
      %913 = vmatprep.subr.mxu0 0.0
      %914 = vmatpush1.msra.mxu0 0.0
      %915 = vmatprep.subr.mxu0 0.0
      %916 = vmatpush1.msra.mxu0 0.0
      %917 = vmatprep.subr.mxu0 0.0
      %918 = vmatpush1.msra.mxu0 0.0
      %919 = vmatprep.subr.mxu0 0.0
      %920 = vmatpush1.msra.mxu0 0.0
      %921 = vmatprep.subr.mxu0 0.0
      %922 = vmatpush1.msra.mxu0 0.0
      %923 = vmatprep.subr.mxu0 0.0
      %924 = vmatpush1.msra.mxu0 0.0
      %925 = vmatprep.subr.mxu0 0.0
      %926 = vmatpush1.msra.mxu0 0.0
      %927 = vmatprep.subr.mxu0 0.0
      %928 = vmatpush1.msra.mxu0 0.0
      %929 = vmatprep.subr.mxu0 0.0
      %930 = vmatpush1.msra.mxu0 0.0
      %931 = vmatprep.subr.mxu0 0.0
      %932 = vmatpush1.msra.mxu0 0.0
      %933 = vmatprep.subr.mxu0 0.0
      %934 = vmatpush1.msra.mxu0 0.0
      %935 = vmatprep.subr.mxu0 0.0
      %936 = vmatpush1.msra.mxu0 0.0
      %937 = vmatprep.mubr.f32.mxu0 0.0
      %v938 = vand.u32 %v242, 4294901760
      %v939 = vsub.f32 %v242, %v938
      %940 = vmatmul.mubr.f32.gmra.mrb[0].mxu0 %v939
      %v941 = vpop.f32.mrb[0].mxu0
      %v942 = vadd.f32 %v865, %v941
      %v943 = vpop.f32.mrb[0].mxu0
      %v944 = vadd.f32 %v867, %v943
      %945 = vdwg.mxu0
      %v946 = vand.u32 %v239, 4294901760
      %947 = vmatprep.subr.mxu0 %v946
      %v948 = vand.u32 %v238, 4294901760
      %949 = vmatpush1.msra.mxu0 %v948
      %950 = vmatprep.subr.mxu0 0.0
      %951 = vmatpush1.msra.mxu0 0.0
      %952 = vmatprep.subr.mxu0 0.0
      %953 = vmatpush1.msra.mxu0 0.0
      %954 = vmatprep.subr.mxu0 0.0
      %955 = vmatpush1.msra.mxu0 0.0
      %956 = vmatprep.subr.mxu0 0.0
      %957 = vmatpush1.msra.mxu0 0.0
      %958 = vmatprep.subr.mxu0 0.0
      %959 = vmatpush1.msra.mxu0 0.0
      %960 = vmatprep.subr.mxu0 0.0
      %961 = vmatpush1.msra.mxu0 0.0
      %962 = vmatprep.subr.mxu0 0.0
      %963 = vmatpush1.msra.mxu0 0.0
      %964 = vmatprep.subr.mxu0 0.0
      %965 = vmatpush1.msra.mxu0 0.0
      %966 = vmatprep.subr.mxu0 0.0
      %967 = vmatpush1.msra.mxu0 0.0
      %968 = vmatprep.subr.mxu0 0.0
      %969 = vmatpush1.msra.mxu0 0.0
      %970 = vmatprep.subr.mxu0 0.0
      %971 = vmatpush1.msra.mxu0 0.0
      %972 = vmatprep.subr.mxu0 0.0
      %973 = vmatpush1.msra.mxu0 0.0
      %974 = vmatprep.subr.mxu0 0.0
      %975 = vmatpush1.msra.mxu0 0.0
      %976 = vmatprep.subr.mxu0 0.0
      %977 = vmatpush1.msra.mxu0 0.0
      %978 = vmatprep.subr.mxu0 0.0
      %979 = vmatpush1.msra.mxu0 0.0
      %980 = vmatprep.subr.mxu0 0.0
      %981 = vmatpush1.msra.mxu0 0.0
      %982 = vmatprep.subr.mxu0 0.0
      %983 = vmatpush1.msra.mxu0 0.0
      %984 = vmatprep.subr.mxu0 0.0
      %985 = vmatpush1.msra.mxu0 0.0
      %986 = vmatprep.subr.mxu0 0.0
      %987 = vmatpush1.msra.mxu0 0.0
      %988 = vmatprep.subr.mxu0 0.0
      %989 = vmatpush1.msra.mxu0 0.0
      %990 = vmatprep.subr.mxu0 0.0
      %991 = vmatpush1.msra.mxu0 0.0
      %992 = vmatprep.subr.mxu0 0.0
      %993 = vmatpush1.msra.mxu0 0.0
      %994 = vmatprep.subr.mxu0 0.0
      %995 = vmatpush1.msra.mxu0 0.0
      %996 = vmatprep.subr.mxu0 0.0
      %997 = vmatpush1.msra.mxu0 0.0
      %998 = vmatprep.subr.mxu0 0.0
      %999 = vmatpush1.msra.mxu0 0.0
      %1000 = vmatprep.subr.mxu0 0.0
      %1001 = vmatpush1.msra.mxu0 0.0
      %1002 = vmatprep.subr.mxu0 0.0
      %1003 = vmatpush1.msra.mxu0 0.0
      %1004 = vmatprep.subr.mxu0 0.0
      %1005 = vmatpush1.msra.mxu0 0.0
      %1006 = vmatprep.subr.mxu0 0.0
      %1007 = vmatpush1.msra.mxu0 0.0
      %1008 = vmatprep.subr.mxu0 0.0
      %1009 = vmatpush1.msra.mxu0 0.0
      %1010 = vmatprep.subr.mxu0 0.0
      %1011 = vmatpush1.msra.mxu0 0.0
      %1012 = vmatprep.mubr.f32.mxu0 0.0
      %v1013 = vand.u32 %v242, 4294901760
      %v1014 = vsub.f32 %v242, %v1013
      %v1015 = vand.u32 %v1014, 4294901760
      %1016 = vmatmul.mubr.f32.gmra.mrb[0].mxu0 %v1015
      %v1017 = vpop.f32.mrb[0].mxu0
      %v1018 = vadd.f32 %v942, %v1017
      %v1019 = vpop.f32.mrb[0].mxu0
      %v1020 = vadd.f32 %v944, %v1019
      %1021 = vdwg.mxu0
      %v1022 = vand.u32 %v239, 4294901760
      %v1023 = vsub.f32 %v239, %v1022
      %v1024 = vand.u32 %v1023, 4294901760
      %1025 = vmatprep.subr.mxu0 %v1024
      %v1026 = vand.u32 %v238, 4294901760
      %v1027 = vsub.f32 %v238, %v1026
      %v1028 = vand.u32 %v1027, 4294901760
      %1029 = vmatpush1.msra.mxu0 %v1028
      %1030 = vmatprep.subr.mxu0 0.0
      %1031 = vmatpush1.msra.mxu0 0.0
      %1032 = vmatprep.subr.mxu0 0.0
      %1033 = vmatpush1.msra.mxu0 0.0
      %1034 = vmatprep.subr.mxu0 0.0
      %1035 = vmatpush1.msra.mxu0 0.0
      %1036 = vmatprep.subr.mxu0 0.0
      %1037 = vmatpush1.msra.mxu0 0.0
      %1038 = vmatprep.subr.mxu0 0.0
      %1039 = vmatpush1.msra.mxu0 0.0
      %1040 = vmatprep.subr.mxu0 0.0
      %1041 = vmatpush1.msra.mxu0 0.0
      %1042 = vmatprep.subr.mxu0 0.0
      %1043 = vmatpush1.msra.mxu0 0.0
      %1044 = vmatprep.subr.mxu0 0.0
      %1045 = vmatpush1.msra.mxu0 0.0
      %1046 = vmatprep.subr.mxu0 0.0
      %1047 = vmatpush1.msra.mxu0 0.0
      %1048 = vmatprep.subr.mxu0 0.0
      %1049 = vmatpush1.msra.mxu0 0.0
      %1050 = vmatprep.subr.mxu0 0.0
      %1051 = vmatpush1.msra.mxu0 0.0
      %1052 = vmatprep.subr.mxu0 0.0
      %1053 = vmatpush1.msra.mxu0 0.0
      %1054 = vmatprep.subr.mxu0 0.0
      %1055 = vmatpush1.msra.mxu0 0.0
      %1056 = vmatprep.subr.mxu0 0.0
      %1057 = vmatpush1.msra.mxu0 0.0
      %1058 = vmatprep.subr.mxu0 0.0
      %1059 = vmatpush1.msra.mxu0 0.0
      %1060 = vmatprep.subr.mxu0 0.0
      %1061 = vmatpush1.msra.mxu0 0.0
      %1062 = vmatprep.subr.mxu0 0.0
      %1063 = vmatpush1.msra.mxu0 0.0
      %1064 = vmatprep.subr.mxu0 0.0
      %1065 = vmatpush1.msra.mxu0 0.0
      %1066 = vmatprep.subr.mxu0 0.0
      %1067 = vmatpush1.msra.mxu0 0.0
      %1068 = vmatprep.subr.mxu0 0.0
      %1069 = vmatpush1.msra.mxu0 0.0
      %1070 = vmatprep.subr.mxu0 0.0
      %1071 = vmatpush1.msra.mxu0 0.0
      %1072 = vmatprep.subr.mxu0 0.0
      %1073 = vmatpush1.msra.mxu0 0.0
      %1074 = vmatprep.subr.mxu0 0.0
      %1075 = vmatpush1.msra.mxu0 0.0
      %1076 = vmatprep.subr.mxu0 0.0
      %1077 = vmatpush1.msra.mxu0 0.0
      %1078 = vmatprep.subr.mxu0 0.0
      %1079 = vmatpush1.msra.mxu0 0.0
      %1080 = vmatprep.subr.mxu0 0.0
      %1081 = vmatpush1.msra.mxu0 0.0
      %1082 = vmatprep.subr.mxu0 0.0
      %1083 = vmatpush1.msra.mxu0 0.0
      %1084 = vmatprep.subr.mxu0 0.0
      %1085 = vmatpush1.msra.mxu0 0.0
      %1086 = vmatprep.subr.mxu0 0.0
      %1087 = vmatpush1.msra.mxu0 0.0
      %1088 = vmatprep.subr.mxu0 0.0
      %1089 = vmatpush1.msra.mxu0 0.0
      %1090 = vmatprep.subr.mxu0 0.0
      %1091 = vmatpush1.msra.mxu0 0.0
      %1092 = vmatprep.mubr.f32.mxu0 0.0
      %v1093 = vand.u32 %v242, 4294901760
      %1094 = vmatmul.mubr.f32.gmra.mrb[0].mxu0 %v1093
      %v1095 = vpop.f32.mrb[0].mxu0
      %v1096 = vadd.f32 %v1018, %v1095
      %v1097 = vpop.f32.mrb[0].mxu0
      %v1098 = vadd.f32 %v1020, %v1097
      %1099 = vdwg.mxu0
      %v1100 = vand.u32 %v239, 4294901760
      %1101 = vmatprep.subr.mxu0 %v1100
      %v1102 = vand.u32 %v238, 4294901760
      %1103 = vmatpush1.msra.mxu0 %v1102
      %1104 = vmatprep.subr.mxu0 0.0
      %1105 = vmatpush1.msra.mxu0 0.0
      %1106 = vmatprep.subr.mxu0 0.0
      %1107 = vmatpush1.msra.mxu0 0.0
      %1108 = vmatprep.subr.mxu0 0.0
      %1109 = vmatpush1.msra.mxu0 0.0
      %1110 = vmatprep.subr.mxu0 0.0
      %1111 = vmatpush1.msra.mxu0 0.0
      %1112 = vmatprep.subr.mxu0 0.0
      %1113 = vmatpush1.msra.mxu0 0.0
      %1114 = vmatprep.subr.mxu0 0.0
      %1115 = vmatpush1.msra.mxu0 0.0
      %1116 = vmatprep.subr.mxu0 0.0
      %1117 = vmatpush1.msra.mxu0 0.0
      %1118 = vmatprep.subr.mxu0 0.0
      %1119 = vmatpush1.msra.mxu0 0.0
      %1120 = vmatprep.subr.mxu0 0.0
      %1121 = vmatpush1.msra.mxu0 0.0
      %1122 = vmatprep.subr.mxu0 0.0
      %1123 = vmatpush1.msra.mxu0 0.0
      %1124 = vmatprep.subr.mxu0 0.0
      %1125 = vmatpush1.msra.mxu0 0.0
      %1126 = vmatprep.subr.mxu0 0.0
      %1127 = vmatpush1.msra.mxu0 0.0
      %1128 = vmatprep.subr.mxu0 0.0
      %1129 = vmatpush1.msra.mxu0 0.0
      %1130 = vmatprep.subr.mxu0 0.0
      %1131 = vmatpush1.msra.mxu0 0.0
      %1132 = vmatprep.subr.mxu0 0.0
      %1133 = vmatpush1.msra.mxu0 0.0
      %1134 = vmatprep.subr.mxu0 0.0
      %1135 = vmatpush1.msra.mxu0 0.0
      %1136 = vmatprep.subr.mxu0 0.0
      %1137 = vmatpush1.msra.mxu0 0.0
      %1138 = vmatprep.subr.mxu0 0.0
      %1139 = vmatpush1.msra.mxu0 0.0
      %1140 = vmatprep.subr.mxu0 0.0
      %1141 = vmatpush1.msra.mxu0 0.0
      %1142 = vmatprep.subr.mxu0 0.0
      %1143 = vmatpush1.msra.mxu0 0.0
      %1144 = vmatprep.subr.mxu0 0.0
      %1145 = vmatpush1.msra.mxu0 0.0
      %1146 = vmatprep.subr.mxu0 0.0
      %1147 = vmatpush1.msra.mxu0 0.0
      %1148 = vmatprep.subr.mxu0 0.0
      %1149 = vmatpush1.msra.mxu0 0.0
      %1150 = vmatprep.subr.mxu0 0.0
      %1151 = vmatpush1.msra.mxu0 0.0
      %1152 = vmatprep.subr.mxu0 0.0
      %1153 = vmatpush1.msra.mxu0 0.0
      %1154 = vmatprep.subr.mxu0 0.0
      %1155 = vmatpush1.msra.mxu0 0.0
      %1156 = vmatprep.subr.mxu0 0.0
      %1157 = vmatpush1.msra.mxu0 0.0
      %1158 = vmatprep.subr.mxu0 0.0
      %1159 = vmatpush1.msra.mxu0 0.0
      %1160 = vmatprep.subr.mxu0 0.0
      %1161 = vmatpush1.msra.mxu0 0.0
      %1162 = vmatprep.subr.mxu0 0.0
      %1163 = vmatpush1.msra.mxu0 0.0
      %1164 = vmatprep.subr.mxu0 0.0
      %1165 = vmatpush1.msra.mxu0 0.0
      %1166 = vmatprep.mubr.f32.mxu0 0.0
      %v1167 = vand.u32 %v242, 4294901760
      %1168 = vmatmul.mubr.f32.gmra.mrb[0].mxu0 %v1167
      %v1169 = vpop.f32.mrb[0].mxu0
      %v1170 = vadd.f32 %v1096, %v1169
      %v1171 = vpop.f32.mrb[0].mxu0
      %v1172 = vadd.f32 %v1098, %v1171
      %1173 = vdwg.mxu0
      %v1178 = vcombine.low %v705, %v707
      %v1179 = vcombine.low %v1170, %v1172
      %v1182 = vadd.f32 %v233, %v1178
      %v1183 = vadd.f32 %v234, %v1179
      %1184 = vst [vmem:[#allocation2] sm:$0xff] %v1182
      %1185 = vst [vmem:[#allocation2 + $0x8] sm:$0xff] %v1183
      // Predicated region
      $region33: #{_lambda_.1} parent=27 // pred_check
        %p1186 = pneg %p227
      $region34: #{_lambda_.1} parent=27 // pred_check_branch
        %1188 = sbr.rel (%p1186) target = $region36
      $region35: #{_lambda_.1} parent=27 // pred_region
        %v1189 = vld [vmem:[#allocation2] sm:$0xff]
        %v1190 = vld [vmem:[#allocation2 + $0x8] sm:$0xff]
        %1191 = vst [vmem:[%s224] sm:$0xff] %v1189
        %1192 = vst [vmem:[%s224 + $0x8] sm:$0xff] %v1190
      $region36: #{_lambda_.1} parent=27 // pred_fallthru
        _
      %s1193 = sadd.s32 %s18, %s19
      %s1194 = smul.u32 4, %s1193
      %p1195 = scmp.lt.s32.totalorder %s1194, 7
      %s1196 = scalar_select %p1195, %s1194, 7
      %s1197 = smul.addr %s1196, 4
      %s1198 = scalar_lea.vmem %s2, %s1197
      // Predicated region
      $region37: #{_lambda_.1} parent=27 // pred_check
        %p1199 = pneg %p110
      $region38: #{_lambda_.1} parent=27 // pred_check_branch
        %1201 = sbr.rel (%p1199) target = $region40
      $region39: #{_lambda_.1} parent=27 // pred_region
        %s1202 = sadd.s32 %s18, %s19
        %s1203 = smul.u32 4, %s1202
      $region40: #{_lambda_.1} parent=27 // pred_fallthru
        _
    $region28: #{_lambda_.1} parent=5 // pred_fallthru
      _
    %p1204 = scmp.le.s32.totalorder 2, %s8
    // Predicated region
    $region41: #{_lambda_.1} parent=5 // pred_check
      %p1205 = pneg %p1204
    $region42: #{_lambda_.1} parent=5 // pred_check_branch
      %1207 = sbr.rel (%p1205) target = $region44
    $region43: #{_lambda_.1} parent=5 // pred_region
      %s1208 = ssub.s32 %s8, 2
      // Predicated region
      $region45: #{_lambda_.1} parent=43 // pred_check
        %p1209 = pneg %p116
      $region46: #{_lambda_.1} parent=43 // pred_check_branch
        %1211 = sbr.rel (%p1209) target = $region48
      $region47: #{_lambda_.1} parent=43 // pred_region
        %s1212 = sadd.s32 %s21, %s22
        %s1213 = smul.u32 4, %s1212
        %p1214 = scmp.lt.s32.totalorder %s1213, 7
        %s1215 = scalar_select %p1214, %s1213, 7
        %s1216 = smul.addr %s1215, 4
        %s1217 = scalar_lea.vmem %s2, %s1216
      $region48: #{_lambda_.1} parent=43 // pred_fallthru
        _
    $region44: #{_lambda_.1} parent=5 // pred_fallthru
      _
  $region6: #{_lambda_.1} parent=0 // loop_footer
    %s12 = sadd.s32 1, %s8
  $region7: #{_lambda_.1} parent=0 // loop_footer_branch
    %7 = sbr.rel target = $region3
  $region8: #{_lambda_.1} parent=0 // loop_exit
    _

</llo_original>
